<compile_context>
chip_gen: v6e
topology: v6e:2x2x1
jax: 0.10.0
libtpu: 0.0.40
codegen_flags: <defaults>
</compile_context>

<pallas_src>
import jax
import jax.numpy as jnp
import numpy as np
from jax.experimental import pallas as pl
from jax.experimental.pallas import tpu as pltpu


# ----------------------------------------------------------------------------
# Pallas kernel: whole-array HBM -> HBM DMA copy (no VMEM staging)
# ----------------------------------------------------------------------------
def _hbm_copy_kernel(x_hbm_ref, o_hbm_ref, copy_sem):
    # Single DMA descriptor for the full array: source and destination share the
    # same shape/dtype/layout, so the copy is a straight DMA-engine memcpy.
    copy = pltpu.make_async_copy(x_hbm_ref, o_hbm_ref, copy_sem)
    copy.start()
    copy.wait()


@jax.jit
def pallas_identity(x: jax.Array) -> jax.Array:
    """Identity copy of `x` via one HBM->HBM DMA issued from a Pallas kernel.

    No padding, no reshape, no VMEM staging: works for any shape/dtype and runs
    at DMA/HBM roofline.  (For the stub module the true "fastest path" would be
    to return `x` unchanged; this kernel exists as the Pallas smoke test.)
    """
    return pl.pallas_call(
        _hbm_copy_kernel,
        out_shape=jax.ShapeDtypeStruct(x.shape, x.dtype),
        in_specs=[pl.BlockSpec(memory_space=pl.ANY)],   # raw HBM ref, no auto-DMA
        out_specs=pl.BlockSpec(memory_space=pl.ANY),    # raw HBM ref, no auto-DMA
        scratch_shapes=[pltpu.SemaphoreType.DMA],       # DMA completion semaphore
    )(x)


# ----------------------------------------------------------------------------
# Module-equivalent wrapper (stub-faithful)
# ----------------------------------------------------------------------------
class ServiceAlarmClassifier:
    """JAX/Pallas port of the (stub) PyTorch ServiceAlarmClassifier."""

    def __init__(self):
        # Reference __init__ defines no parameters; nothing to initialize.
        pass

    def forward(self, x):
        # Reference forward() body is `pass` -> returns None.
        # Production path short-circuits: no hidden device work, no host sync.
        # TODO(synk): plug in the real classifier head (Pallas matmul kernel)
        #             when it is defined upstream.
        return None

    def loss(self, inputs, targets):
        # TODO(synk): reference loss() is an empty stub (`pass`); nothing to port.
        return None


# ----------------------------------------------------------------------------
# Driver
# ----------------------------------------------------------------------------
if __name__ == "__main__":
    key = jax.random.PRNGKey(0)
    # Small NCHW input consistent with a detector-style feature map.
    x = jax.random.normal(key, (2, 4, 16, 16), dtype=jnp.float32)

    # Detached host reference copy taken BEFORE running the kernel, so the
    # check cannot be fooled by aliasing or trivially comparing device buffers.
    x_host = np.asarray(jax.device_get(x))

    # Run the Pallas HBM->HBM copy kernel once and verify bit-exactness.
    y = pallas_identity(x)
    jax.block_until_ready(y)
    assert y.shape == x.shape and y.dtype == x.dtype
    y_host = np.asarray(jax.device_get(y))
    assert np.array_equal(y_host, x_host)

    # Second smoke test: a lane-dense 2-D slab (wide last dim), different dtype,
    # to exercise the same DMA path on a layout-aligned buffer.
    x2 = jax.random.normal(jax.random.PRNGKey(1), (8, 256), dtype=jnp.float32)
    x2_host = np.asarray(jax.device_get(x2))
    y2 = pallas_identity(x2)
    jax.block_until_ready(y2)
    assert np.array_equal(np.asarray(jax.device_get(y2)), x2_host)

    # Module-faithful forward/loss (return None, like the PyTorch stub; no device work).
    model = ServiceAlarmClassifier()
    assert model.forward(x) is None
    assert model.loss(x, None) is None

    print("KERNEL_OK")
</pallas_src>

<mosaic_0001>
module attributes {stable_mosaic.version = 11 : i64} {
  func.func @_hbm_copy_kernel(%arg0: memref<2x4x16x16xf32, #tpu.memory_space<any>>, %arg1: memref<2x4x16x16xf32, #tpu.memory_space<any>>, %arg2: memref<!tpu.dma_semaphore, #tpu.memory_space<semaphore_mem>>) attributes {dimension_semantics = [], scalar_prefetch = 0 : i64, scratch_operands = 1 : i64, tpu.core_type = #tpu.core_type<tc>} {
    tpu.enqueue_dma source(%arg0 : memref<2x4x16x16xf32, #tpu.memory_space<any>>) target(%arg1 : memref<2x4x16x16xf32, #tpu.memory_space<any>>) target_semaphore(%arg2 : memref<!tpu.dma_semaphore, #tpu.memory_space<semaphore_mem>>)
    tpu.wait_dma2 semaphore(%arg2 : memref<!tpu.dma_semaphore, #tpu.memory_space<semaphore_mem>>) src(%arg0 : memref<2x4x16x16xf32, #tpu.memory_space<any>>) dst(%arg1 : memref<2x4x16x16xf32, #tpu.memory_space<any>>)
    return
  }
}

</mosaic_0001>

<llo_original>
// kernel: pallas_identity.1
$region0: #{pallas_identity.1}
  #allocation0 [shape = 'u32[]', space=smem, size = 0x4, offset = 0x4, fixed_abs, tag = 'smem constant byte address 0x4 - core index']
  #allocation1 [shape = 'u32[144,128]{1,0:T(1,128)}', space=vmem, size = 0x12000, scoped, tag = 'internal scratch']
  #allocation2 [shape = 's32[1]{0}', space=sflag, size = 0x4, scoped, tag = 'scratch operand']
  #allocation3 [shape = 's32[]', space=sflag, size = 0x4, offset = 0, fixed_abs, tag = 'sflag constant byte address 0x0 - dummy sync flag']
  #allocation4 [shape = 'u32[0]{0}', space=smem, size = 0, offset = 0, fixed_abs, tag = 'smem constant byte address 0x0 - null']
  %s0 = inlined_call_operand.hbm [shape: f32[2,4,16,16], index: 0, kind: input, shape index: {}]
  %s1 = inlined_call_operand.hbm [shape: f32[2,4,16,16], index: 1, kind: output, shape index: {}]
  %s2 = sld [smem:[#allocation0]]
  $region2: #{pallas_identity.1} parent=0
    _
  %s4 = ssub.s32 1, %s2
  %s5 = scalar_select 0, %s4, %s2
  %s7 = sshll.u32 1, 14
  %s8 = sxor.u32 4294967295, %s7
  %12 = dma.general %s0, 2048, %s1, [#allocation2], 131072, [#allocation4], 0, 0
  %s13 = smul.u32 2, 4
  %s14 = smul.u32 %s13, 16
  %s15 = smul.u32 %s14, 1
  %s16 = sshll.u32 %s15, 4
  %17 = dma.done [#allocation2], %s16
  %18 = vsyncmov [#allocation2]
  %s19 = vpop.sfrf %18
  %p20 = scmp.eq.s32.totalorder %s19, 0
  %p21 = pneg %p20
  %23 = shalt.err (%p21)

</llo_original>
